<compile_context>
chip_gen: v7x
topology: tpu7x:2x2x1
jax: 0.10.0
libtpu: 0.0.40
codegen_flags: <defaults>
</compile_context>

<pallas_src>
import jax
import jax.numpy as jnp
from jax.experimental import pallas as pl
from jax.experimental.pallas import tpu as pltpu


_LANE = 128
_BLOCK_BUDGET_BYTES = 6 * 1024 * 1024   # per grid-step (in+out) block; x2 for double-buffering
_MAX_BATCH_UNROLL = 8                   # bound on the static per-step batch unroll


def _pick_batch_block(b, per_image_bytes):
    """Largest divisor of b that fits the VMEM budget, keeps >= 2 grid steps
    when b >= 2 (v7x megacore split), and bounds the static in-kernel unroll."""
    max_nb = max(1, _BLOCK_BUDGET_BYTES // max(per_image_bytes, 1))
    max_nb = min(max_nb, _MAX_BATCH_UNROLL)
    if b >= 2:
        max_nb = min(max_nb, max(1, b // 2))
    nb = 1
    for d in range(1, b + 1):
        if b % d == 0 and d <= max_nb:
            nb = d
    return nb


def _make_conv_bn_kernel(nb, cin, use_mxu):
    """o[i] = w @ x[i] + b for each image i in the batch sub-block.

    x_ref: (Nb, Cin, L) bf16   w_ref: (Cout, Cin) bf16
    b_ref: (Cout, 1)    f32    o_ref: (Nb, Cout, L) f32
    """
    def kernel(x_ref, w_ref, b_ref, o_ref):
        w = w_ref[...]
        b = b_ref[...]
        if use_mxu:
            w_cols = None
        else:
            # v5e VPU has no bf16 VALU -> upcast once; hoist the per-channel
            # weight-column (lane-broadcast) slices out of the batch loop.
            wf = w.astype(jnp.float32)
            w_cols = [wf[:, c:c + 1] for c in range(cin)]
        for i in range(nb):                       # static unroll (nb capped small)
            x = x_ref[i]
            if use_mxu:
                # K = Cin big enough to ride the otherwise-idle MXU slot.
                y = jax.lax.dot_general(
                    w, x, dimension_numbers=(((1,), (0,)), ((), ())),
                    preferred_element_type=jnp.float32)
            else:
                # Tiny contraction: unrolled VPU broadcast-FMAs, f32 accumulation.
                xf = x.astype(jnp.float32)
                terms = [w_cols[c] * xf[c:c + 1, :] for c in range(cin)]
                # Balanced pairwise tree: breaks the serial length-Cin add chain.
                while len(terms) > 1:
                    nxt = [terms[j] + terms[j + 1]
                           for j in range(0, len(terms) - 1, 2)]
                    if len(terms) % 2 == 1:
                        nxt.append(terms[-1])
                    terms = nxt
                y = terms[0]
            o_ref[i] = y + b
    return kernel


def _conv1x1_bn(x_nchw, weight, gamma, beta, running_mean, running_var, eps=1e-5):
    """1x1 conv (bias=False) + BatchNorm2d (eval mode), fused in one Pallas kernel."""
    n, cin, h, w = x_nchw.shape
    cout = weight.shape[0]
    hw = h * w

    # Fold BN into the conv weight (per output channel) and a bias column (glue).
    inv_std = 1.0 / jnp.sqrt(running_var + eps)
    scale = (gamma * inv_std).astype(jnp.float32)                        # (Cout,)
    bias_col = (beta - running_mean * scale).reshape(cout, 1).astype(jnp.float32)
    w_scaled = weight.reshape(cout, cin).astype(jnp.float32) * scale[:, None]

    # NCHW -> (N, Cin, H*W): pure reshape.  bf16 at the boundary: the kernel is
    # HBM-bound (arith intensity << roofline knee), so halving input bytes is
    # ~free throughput; accumulation stays f32 inside the kernel.
    x3 = x_nchw.reshape(n, cin, hw).astype(jnp.bfloat16)
    w_k = w_scaled.astype(jnp.bfloat16)

    # Lane-dense store slab: if H*W < 128 the per-image output last dim would
    # lower to masked vst.msk partial stores; fold N into the lane dimension
    # instead (one wrapper-side transpose each way, no extra compute).
    pack_n = hw < _LANE and n > 1
    if pack_n:
        x_k = x3.transpose(1, 0, 2).reshape(1, cin, n * hw)
        b_eff, l_eff = 1, n * hw
    else:
        x_k = x3
        b_eff, l_eff = n, hw

    per_image_bytes = cin * l_eff * 2 + cout * l_eff * 4     # bf16 in + f32 out
    nb = _pick_batch_block(b_eff, per_image_bytes)
    grid_b = b_eff // nb

    use_mxu = cin >= 16   # below ~16 the unrolled VPU path wins; above, use MXU
    kernel = _make_conv_bn_kernel(nb, cin, use_mxu)

    cost = pl.CostEstimate(
        flops=2 * b_eff * l_eff * cin * cout,
        transcendentals=0,
        bytes_accessed=(2 * b_eff * cin * l_eff + 2 * cout * cin + 4 * cout
                        + 4 * b_eff * cout * l_eff),
    )

    # NOTE: the weight / bias blocks have constant index_maps (resident).  They
    # are tiny, so the extra pipeline buffer is negligible; pipeline_mode=
    # pl.Buffered(1) could drop it but is skipped for compile-compat safety.
    out_k = pl.pallas_call(
        kernel,
        out_shape=jax.ShapeDtypeStruct((b_eff, cout, l_eff), jnp.float32),
        grid_spec=pltpu.PrefetchScalarGridSpec(
            num_scalar_prefetch=0,
            grid=(grid_b,),
            in_specs=[
                # Full (Cin, L) slab per image-block: last two dims equal the
                # full array dims, so arbitrary Cin / L stay legal.
                pl.BlockSpec((nb, cin, l_eff), lambda b: (b, 0, 0)),
                pl.BlockSpec((cout, cin), lambda b: (0, 0)),   # weights resident
                pl.BlockSpec((cout, 1), lambda b: (0, 0)),     # bias resident
            ],
            out_specs=pl.BlockSpec((nb, cout, l_eff), lambda b: (b, 0, 0)),
        ),
        compiler_params=pltpu.CompilerParams(
            dimension_semantics=("parallel",)),   # megacore-shardable over batch blocks
        cost_estimate=cost,
    )(x_k, w_k, bias_col)

    if pack_n:
        out3 = out_k.reshape(cout, n, hw).transpose(1, 0, 2)
    else:
        out3 = out_k
    # (N, Cout, H*W) -> NCHW: free reshape.
    return out3.reshape(n, cout, h, w)


class AdjustLayer:
    """JAX/Pallas port of nanotrack AdjustLayer (deterministic synthetic params)."""

    def __init__(self, in_channels, out_channels, key):
        self.in_channels = in_channels
        self.out_channels = out_channels
        if in_channels != out_channels:
            k_w, k_g, k_b, k_m, k_v = jax.random.split(key, 5)
            # Conv2d(in, out, 1, bias=False) weight: (Cout, Cin, 1, 1)
            self.weight = jax.random.normal(
                k_w, (out_channels, in_channels, 1, 1), jnp.float32) * 0.1
            # BatchNorm2d(out) params (eval-mode running stats).
            self.gamma = 1.0 + 0.1 * jax.random.normal(k_g, (out_channels,), jnp.float32)
            self.beta = 0.1 * jax.random.normal(k_b, (out_channels,), jnp.float32)
            self.running_mean = 0.1 * jax.random.normal(k_m, (out_channels,), jnp.float32)
            self.running_var = jnp.abs(
                1.0 + 0.1 * jax.random.normal(k_v, (out_channels,), jnp.float32))
        else:
            self.weight = None

    def __call__(self, x):
        if self.in_channels != self.out_channels:
            # 1x1 conv is spatially pointwise, so cropping first is bit-identical
            # to conv-then-crop and cuts the fused kernel's bytes / FLOPs by 4x.
            if x.shape[3] < 16:
                x = x[:, :, 2:6, 2:6]
            x = _conv1x1_bn(x, self.weight, self.gamma, self.beta,
                            self.running_mean, self.running_var)
        elif x.shape[3] < 16:
            x = x[:, :, 2:6, 2:6]
        return x

    def reference(self, x):
        """Pure-JAX f32 reference mirroring the PyTorch forward (conv -> BN -> crop)."""
        if self.in_channels != self.out_channels:
            w = self.weight.reshape(self.out_channels, self.in_channels)
            y = jnp.einsum('nchw,oc->nohw', x, w,
                           precision=jax.lax.Precision.HIGHEST)
            inv_std = 1.0 / jnp.sqrt(self.running_var + 1e-5)
            scale = (self.gamma * inv_std).reshape(1, -1, 1, 1)
            bias = (self.beta - self.running_mean * self.gamma * inv_std
                    ).reshape(1, -1, 1, 1)
            x = y * scale + bias
        if x.shape[3] < 16:
            x = x[:, :, 2:6, 2:6]
        return x


class AdjustAllLayer:
    # TODO(synk): at these problem sizes the layer is pallas_call-launch-bound;
    # the (conv) branches could be fused into one pallas_call (branch as an
    # extra grid axis / multiple outputs) if more than one conv branch is hot.
    def __init__(self, in_channels, out_channels, key=None):
        if key is None:
            key = jax.random.PRNGKey(0)
        self.num = len(out_channels)
        keys = jax.random.split(key, self.num)
        self.layers = [AdjustLayer(in_channels[i], out_channels[i], keys[i])
                       for i in range(self.num)]

    def __call__(self, features):
        if self.num == 1:
            return self.layers[0](features)
        return [self.layers[i](features[i]) for i in range(self.num)]

    def reference(self, features):
        if self.num == 1:
            return self.layers[0].reference(features)
        return [self.layers[i].reference(features[i]) for i in range(self.num)]


if __name__ == "__main__":
    key = jax.random.PRNGKey(0)
    k_model, k_x0, k_x1, k_x2 = jax.random.split(key, 4)

    # Three branches:
    #  - branch 0: Cin != Cout, 16x16 -> fused conv1x1+BN kernel (grid of 2 batch
    #              blocks, lane dim 256), no crop
    #  - branch 1: Cin == Cout, 8x8   -> identity conv path, crop 2:6 (pure slicing)
    #  - branch 2: Cin != Cout, 8x8   -> crop-before-conv + N folded into lanes
    in_channels = [4, 4, 4]
    out_channels = [8, 4, 8]
    model = AdjustAllLayer(in_channels, out_channels, k_model)

    x0 = jax.random.normal(k_x0, (2, 4, 16, 16), jnp.float32)
    x1 = jax.random.normal(k_x1, (2, 4, 8, 8), jnp.float32)
    x2 = jax.random.normal(k_x2, (2, 4, 8, 8), jnp.float32)
    features = [x0, x1, x2]

    outs = model(features)
    outs = [jax.block_until_ready(o) for o in outs]

    refs = model.reference(features)

    assert outs[0].shape == (2, 8, 16, 16), outs[0].shape
    assert outs[1].shape == (2, 4, 4, 4), outs[1].shape
    assert outs[2].shape == (2, 8, 4, 4), outs[2].shape
    # Kernel uses bf16 inputs with f32 accumulation, so compare against the
    # pure-f32 reference with a bf16-appropriate tolerance.
    for o, r in zip(outs, refs):
        assert o.shape == r.shape, (o.shape, r.shape)
        assert bool(jnp.allclose(o, r, atol=5e-2, rtol=5e-2)), \
            float(jnp.max(jnp.abs(o - r)))

    print("KERNEL_OK")
</pallas_src>

<mosaic_0001>
module attributes {stable_mosaic.version = 11 : i64} {
  func.func @kernel(%arg0: i32, %arg1: memref<1x4x256xbf16, #tpu.memory_space<vmem>>, %arg2: memref<8x4xbf16, #tpu.memory_space<vmem>>, %arg3: memref<8x1xf32, #tpu.memory_space<vmem>>, %arg4: memref<1x8x256xf32, #tpu.memory_space<vmem>>) attributes {dimension_semantics = [#tpu.dimension_semantics<parallel>], iteration_bounds = array<i64: 2>, scalar_prefetch = 0 : i64, scratch_operands = 0 : i64, tpu.core_type = #tpu.core_type<tc>, window_params = [{transform_indices = @transform_0, window_bounds = array<i64: 1, 4, 256>}, {pipeline_mode = #tpu.pipeline_mode<synchronous>, transform_indices = @transform_1, window_bounds = array<i64: 8, 4>}, {pipeline_mode = #tpu.pipeline_mode<synchronous>, transform_indices = @transform_2, window_bounds = array<i64: 8, 1>}, {transform_indices = @transform_3, window_bounds = array<i64: 1, 8, 256>}]} {
    %c0 = arith.constant 0 : index
    %c0_0 = arith.constant 0 : index
    %0 = vector.load %arg2[%c0, %c0_0] : memref<8x4xbf16, #tpu.memory_space<vmem>>, vector<8x4xbf16>
    %c0_1 = arith.constant 0 : index
    %c0_2 = arith.constant 0 : index
    %1 = vector.load %arg3[%c0_1, %c0_2] : memref<8x1xf32, #tpu.memory_space<vmem>>, vector<8x1xf32>
    %2 = arith.extf %0 : vector<8x4xbf16> to vector<8x4xf32>
    %3 = vector.extract_strided_slice %2 {offsets = [0, 0], sizes = [8, 1], strides = [1, 1]} : vector<8x4xf32> to vector<8x1xf32>
    %4 = vector.extract_strided_slice %2 {offsets = [0, 1], sizes = [8, 1], strides = [1, 1]} : vector<8x4xf32> to vector<8x1xf32>
    %5 = vector.extract_strided_slice %2 {offsets = [0, 2], sizes = [8, 1], strides = [1, 1]} : vector<8x4xf32> to vector<8x1xf32>
    %6 = vector.extract_strided_slice %2 {offsets = [0, 3], sizes = [8, 1], strides = [1, 1]} : vector<8x4xf32> to vector<8x1xf32>
    %c0_3 = arith.constant 0 : index
    %c0_4 = arith.constant 0 : index
    %c0_5 = arith.constant 0 : index
    %7 = vector.load %arg1[%c0_3, %c0_4, %c0_5] : memref<1x4x256xbf16, #tpu.memory_space<vmem>>, vector<1x4x256xbf16>
    %8 = vector.shape_cast %7 : vector<1x4x256xbf16> to vector<4x256xbf16>
    %9 = arith.extf %8 : vector<4x256xbf16> to vector<4x256xf32>
    %10 = vector.extract_strided_slice %9 {offsets = [0, 0], sizes = [1, 256], strides = [1, 1]} : vector<4x256xf32> to vector<1x256xf32>
    %11 = vector.broadcast %3 : vector<8x1xf32> to vector<8x256xf32>
    %12 = vector.broadcast %10 : vector<1x256xf32> to vector<8x256xf32>
    %13 = arith.mulf %11, %12 : vector<8x256xf32>
    %14 = vector.extract_strided_slice %9 {offsets = [1, 0], sizes = [1, 256], strides = [1, 1]} : vector<4x256xf32> to vector<1x256xf32>
    %15 = vector.broadcast %4 : vector<8x1xf32> to vector<8x256xf32>
    %16 = vector.broadcast %14 : vector<1x256xf32> to vector<8x256xf32>
    %17 = arith.mulf %15, %16 : vector<8x256xf32>
    %18 = vector.extract_strided_slice %9 {offsets = [2, 0], sizes = [1, 256], strides = [1, 1]} : vector<4x256xf32> to vector<1x256xf32>
    %19 = vector.broadcast %5 : vector<8x1xf32> to vector<8x256xf32>
    %20 = vector.broadcast %18 : vector<1x256xf32> to vector<8x256xf32>
    %21 = arith.mulf %19, %20 : vector<8x256xf32>
    %22 = vector.extract_strided_slice %9 {offsets = [3, 0], sizes = [1, 256], strides = [1, 1]} : vector<4x256xf32> to vector<1x256xf32>
    %23 = vector.broadcast %6 : vector<8x1xf32> to vector<8x256xf32>
    %24 = vector.broadcast %22 : vector<1x256xf32> to vector<8x256xf32>
    %25 = arith.mulf %23, %24 : vector<8x256xf32>
    %26 = arith.addf %13, %17 : vector<8x256xf32>
    %27 = arith.addf %21, %25 : vector<8x256xf32>
    %28 = arith.addf %26, %27 : vector<8x256xf32>
    %29 = vector.broadcast %1 : vector<8x1xf32> to vector<8x256xf32>
    %30 = arith.addf %28, %29 : vector<8x256xf32>
    %c0_6 = arith.constant 0 : index
    %c0_7 = arith.constant 0 : index
    %c0_8 = arith.constant 0 : index
    %31 = vector.load %arg4[%c0_6, %c0_7, %c0_8] : memref<1x8x256xf32, #tpu.memory_space<vmem>>, vector<1x8x256xf32>
    %32 = vector.shape_cast %31 : vector<1x8x256xf32> to vector<8x256xf32>
    %33 = vector.shape_cast %30 : vector<8x256xf32> to vector<1x8x256xf32>
    tpu.vector_store %arg4[%c0_6, %c0_7, %c0_8], %33 {strides = array<i32>} : memref<1x8x256xf32, #tpu.memory_space<vmem>>, vector<1x8x256xf32>,
    return
  }
  func.func @transform_0(%arg0: i32) -> (i32, i32, i32) {
    %c0_i32 = arith.constant 0 : i32
    %c0_i32_0 = arith.constant 0 : i32
    %c0_i32_1 = arith.constant 0 : i32
    return %arg0, %c0_i32, %c0_i32_0 : i32, i32, i32
  }
  func.func @transform_1(%arg0: i32) -> (i32, i32) {
    %c0_i32 = arith.constant 0 : i32
    %c0_i32_0 = arith.constant 0 : i32
    %c0_i32_1 = arith.constant 0 : i32
    return %c0_i32, %c0_i32_0 : i32, i32
  }
  func.func @transform_2(%arg0: i32) -> (i32, i32) {
    %c0_i32 = arith.constant 0 : i32
    %c0_i32_0 = arith.constant 0 : i32
    %c0_i32_1 = arith.constant 0 : i32
    return %c0_i32, %c0_i32_0 : i32, i32
  }
  func.func @transform_3(%arg0: i32) -> (i32, i32, i32) {
    %c0_i32 = arith.constant 0 : i32
    %c0_i32_0 = arith.constant 0 : i32
    %c0_i32_1 = arith.constant 0 : i32
    return %arg0, %c0_i32, %c0_i32_0 : i32, i32, i32
  }
}

</mosaic_0001>

<llo_original>
// kernel: tpu_custom_call.1
$region0: #{tpu_custom_call.1}
  #allocation0 [shape = 'u32[]', space=smem, size = 0x4, offset = 0x4, fixed_abs, tag = 'smem constant byte address 0x4 - core index']
  #allocation1 [shape = 'u32[144,128]{1,0:T(1,128)}', space=vmem, size = 0x12000, scoped, tag = 'internal scratch']
  %s0 = inlined_call_operand.vmem [shape: bf16[2,4,256], index: 0, kind: input, shape index: {}]
  %s1 = inlined_call_operand.vmem [shape: bf16[8,4], index: 1, kind: input, shape index: {}]
  %s2 = inlined_call_operand.vmem [shape: f32[8,1], index: 2, kind: input, shape index: {}]
  %s3 = inlined_call_operand.hbm [shape: f32[2,8,256], index: 3, kind: output, shape index: {}]
  %s4 = sld [smem:[#allocation0]]
  $region45: #{tpu_custom_call.1} parent=0
    _
  %s6 = ssub.s32 1, %s4
  %s7 = scalar_select 0, %s6, %s4
  $region1: #{tpu_custom_call.1} parent=0
    #allocation2 [shape = 'u8[16384]{0}', space=vmem, size = 0x4000, scoped, tag = 'output window, operand 0']
    #allocation3 [shape = 's32[2]{0}', space=sflag, size = 0x8, scoped, tag = 'scoped memory for tpu_custom_call.1']
    %8 = vsyncpa [#allocation3], 0
    %s9 = scalar_lea.sflag [#allocation3], 1
    %10 = vsyncpa %s9, 0
    loop: start=0, step=1, limit=4
    $region2: #{tpu_custom_call.1} parent=1 // loop_pre_header
      _
    $region3: #{tpu_custom_call.1} parent=1 // loop_header
      %s12 = sphi 0, %s16
      %p13 = scmp.ge.s32.totalorder %s12, 4
      %s22 = sphi 0, %s24
      %s25 = sphi 0, %s22
      %s26 = sphi 0, %s25
      %s42 = sphi 0, %s26
      %s46 = sphi 0, %s46
      %s48 = sphi 0, %s46
      %s49 = sphi 0, %s48
      %s63 = sphi 0, %s49
      %s67 = sphi 0, %s67
      %s69 = sphi 0, %s67
      %s70 = sphi 0, %s69
      %s84 = sphi 0, %s70
      %s90 = sphi 0, %s92
      %s93 = sphi 0, %s90
      %s94 = sphi 0, %s93
      %s110 = sphi 0, %s94
    $region4: #{tpu_custom_call.1} parent=1 // loop_header_branch
      %15 = sbr.rel (%p13) target = $region8
    $region5: #{tpu_custom_call.1} parent=1 // loop_body
      %s17 = ssub.s32 %s12, 1
      %s18 = ssub.s32 %s12, 2
      %s19 = sadd.s32 %s12, 1
      %s20 = ssub.s32 %s12, %s19
      %p21 = scmp.eq.s32.totalorder %s20, 0
      %s23 = sadd.s32 %s22, 1
      %s24 = scalar_select %p21, %s22, %s23
      %p27 = pneg %p21
      %p28 = scmp.eq.s32.totalorder %s12, 1
      %p29 = por %p27, %p28
      %p30 = scmp.ne.s32.totalorder %s22, %s25
      %p31 = scmp.eq.s32.totalorder %s12, 0
      %p32 = por %p30, %p31
      %p33 = scmp.ne.s32.totalorder %s22, %s25
      %p34 = scmp.eq.s32.totalorder %s17, 1
      %p35 = por %p33, %p34
      %p36 = scmp.ne.s32.totalorder %s25, %s26
      %p37 = scmp.eq.s32.totalorder %s17, 0
      %p38 = por %p36, %p37
      %p39 = scmp.ne.s32.totalorder %s25, %s26
      %p40 = scmp.eq.s32.totalorder %s18, 1
      %p41 = por %p39, %p40
      %p43 = scmp.ne.s32.totalorder %s26, %s42
      %p44 = scmp.eq.s32.totalorder %s18, 0
      %p45 = por %p43, %p44
      %s47 = sadd.s32 %s46, 1
      %p50 = scmp.eq.s32.totalorder %s12, 1
      %p51 = scmp.ne.s32.totalorder %s46, %s48
      %p52 = scmp.eq.s32.totalorder %s12, 0
      %p53 = por %p51, %p52
      %p54 = scmp.ne.s32.totalorder %s46, %s48
      %p55 = scmp.eq.s32.totalorder %s17, 1
      %p56 = por %p54, %p55
      %p57 = scmp.ne.s32.totalorder %s48, %s49
      %p58 = scmp.eq.s32.totalorder %s17, 0
      %p59 = por %p57, %p58
      %p60 = scmp.ne.s32.totalorder %s48, %s49
      %p61 = scmp.eq.s32.totalorder %s18, 1
      %p62 = por %p60, %p61
      %p64 = scmp.ne.s32.totalorder %s49, %s63
      %p65 = scmp.eq.s32.totalorder %s18, 0
      %p66 = por %p64, %p65
      %s68 = sadd.s32 %s67, 1
      %p71 = scmp.eq.s32.totalorder %s12, 1
      %p72 = scmp.ne.s32.totalorder %s67, %s69
      %p73 = scmp.eq.s32.totalorder %s12, 0
      %p74 = por %p72, %p73
      %p75 = scmp.ne.s32.totalorder %s67, %s69
      %p76 = scmp.eq.s32.totalorder %s17, 1
      %p77 = por %p75, %p76
      %p78 = scmp.ne.s32.totalorder %s69, %s70
      %p79 = scmp.eq.s32.totalorder %s17, 0
      %p80 = por %p78, %p79
      %p81 = scmp.ne.s32.totalorder %s69, %s70
      %p82 = scmp.eq.s32.totalorder %s18, 1
      %p83 = por %p81, %p82
      %p85 = scmp.ne.s32.totalorder %s70, %s84
      %p86 = scmp.eq.s32.totalorder %s18, 0
      %p87 = por %p85, %p86
      %s88 = ssub.s32 %s12, %s19
      %p89 = scmp.eq.s32.totalorder %s88, 0
      %s91 = sadd.s32 %s90, 1
      %s92 = scalar_select %p89, %s90, %s91
      %p95 = pneg %p89
      %p96 = scmp.eq.s32.totalorder %s12, 1
      %p97 = por %p95, %p96
      %p98 = scmp.ne.s32.totalorder %s90, %s93
      %p99 = scmp.eq.s32.totalorder %s12, 0
      %p100 = por %p98, %p99
      %p101 = scmp.ne.s32.totalorder %s90, %s93
      %p102 = scmp.eq.s32.totalorder %s17, 1
      %p103 = por %p101, %p102
      %p104 = scmp.ne.s32.totalorder %s93, %s94
      %p105 = scmp.eq.s32.totalorder %s17, 0
      %p106 = por %p104, %p105
      %p107 = scmp.ne.s32.totalorder %s93, %s94
      %p108 = scmp.eq.s32.totalorder %s18, 1
      %p109 = por %p107, %p108
      %p111 = scmp.ne.s32.totalorder %s94, %s110
      %p112 = scmp.eq.s32.totalorder %s18, 0
      %p113 = por %p111, %p112
      %p114 = scmp.le.s32.totalorder 1, %s12
      %p115 = scmp.lt.s32.totalorder %s12, 3
      %p116 = pnand %p114, %p115
      %p117 = pneg %p116
      // Predicated region
      $region9: #{tpu_custom_call.1} parent=5 // pred_check
        _
      $region10: #{tpu_custom_call.1} parent=5 // pred_check_branch
        %119 = sbr.rel (%p116) target = $region12
      $region11: #{tpu_custom_call.1} parent=5 // pred_region
        %s120 = ssub.s32 %s12, 1
        // Predicated region
        $region13: #{tpu_custom_call.1} parent=11 // pred_check
          %p121 = pneg %p59
        $region14: #{tpu_custom_call.1} parent=11 // pred_check_branch
          %123 = sbr.rel (%p121) target = $region16
        $region15: #{tpu_custom_call.1} parent=11 // pred_region
          _
        $region16: #{tpu_custom_call.1} parent=11 // pred_fallthru
          _
        // Predicated region
        $region17: #{tpu_custom_call.1} parent=11 // pred_check
          %p124 = pneg %p80
        $region18: #{tpu_custom_call.1} parent=11 // pred_check_branch
          %126 = sbr.rel (%p124) target = $region20
        $region19: #{tpu_custom_call.1} parent=11 // pred_region
          _
        $region20: #{tpu_custom_call.1} parent=11 // pred_fallthru
          _
      $region12: #{tpu_custom_call.1} parent=5 // pred_fallthru
        _
      %p127 = scmp.lt.s32.totalorder %s12, 2
      // Predicated region
      $region21: #{tpu_custom_call.1} parent=5 // pred_check
        %p128 = pneg %p127
      $region22: #{tpu_custom_call.1} parent=5 // pred_check_branch
        %130 = sbr.rel (%p128) target = $region24
      $region23: #{tpu_custom_call.1} parent=5 // pred_region
        // Predicated region
        $region25: #{tpu_custom_call.1} parent=23 // pred_check
          %p131 = pneg %p32
        $region26: #{tpu_custom_call.1} parent=23 // pred_check_branch
          %133 = sbr.rel (%p131) target = $region28
        $region27: #{tpu_custom_call.1} parent=23 // pred_region
          %p134 = scmp.lt.s32.totalorder %s12, 1
          %s135 = scalar_select %p134, %s12, 1
          %s136 = smul.addr %s135, 2
          %s137 = smul.addr %s136, 2
          %s138 = scalar_lea.vmem %s0, %s137
        $region28: #{tpu_custom_call.1} parent=23 // pred_fallthru
          _
      $region24: #{tpu_custom_call.1} parent=5 // pred_fallthru
        _
      %p139 = scmp.le.s32.totalorder 1, %s12
      %p140 = scmp.lt.s32.totalorder %s12, 3
      %p141 = pnand %p139, %p140
      %p142 = pneg %p141
      // Predicated region
      $region29: #{tpu_custom_call.1} parent=5 // pred_check
        _
      $region30: #{tpu_custom_call.1} parent=5 // pred_check_branch
        %144 = sbr.rel (%p141) target = $region32
      $region31: #{tpu_custom_call.1} parent=5 // pred_region
        %s145 = ssub.s32 %s12, 1
        %p146 = scmp.lt.s32.totalorder %s17, 1
        %s147 = scalar_select %p146, %s17, 1
        %s148 = smul.addr %s147, 2
        %s149 = smul.addr %s148, 2
        %s150 = scalar_lea.vmem %s0, %s149
        %p151 = pneg %p38
        %p152 = pneg %p35
        %p153 = pneg %p59
        %p154 = pneg %p56
        %p155 = pneg %p80
        %p156 = pneg %p77
        %p157 = pneg %p106
        %p158 = pneg %p103
        %s159 = sand.u32 %s93, 1
        %s160 = scalar_lea.sflag [#allocation3], %s159
        %s161 = sand.u32 %s93, 1
        %s162 = smul.addr %s161, 16
        %s163 = scalar_lea.vmem [#allocation2], %s162
        %p164 = scmp.lt.s32.totalorder %s17, 1
        %s165 = scalar_select %p164, %s17, 1
        %s166 = smul.addr %s165, 2
        %s167 = smul.addr %s166, 2
        %s168 = scalar_lea.vmem %s0, %s167
        %v169 = vld [vmem:[%s1] sm:$0xf]
        %v170 = vld [vmem:[%s2] sm:$0xff]
        %v171 = vunpack.c.l.bf16 %v169
        %v172 = vld [vmem:[%s168] sm:$0xf]
        %v173 = vunpack.c.l.bf16 %v172
        %175 = vset.pattern.permute.xlu0 0
        %176 = vperm.xlu0 %175, %v171
        %v177 = vpop.permute.xlu0 %176
        %v180 = vlaneseq
        %v181 = vshrl.u32 %v180, 7
        %v182 = vsub.s32 0, %v181
        %v183 = vrot.slane %v173, %v182
        %v184 = vlaneseq
        %v185 = vshrl.u32 %v184, 7
        %v186 = vsub.s32 4, %v185
        %v187 = vrot.slane %v173, %v186
        %v190 = vlaneseq
        %v191 = vshrl.u32 %v190, 7
        %v192 = vsub.s32 0, %v191
        %v193 = vrot.slane %v183, %v192
        %v194 = vlaneseq
        %v195 = vshrl.u32 %v194, 7
        %v196 = vsub.s32 0, %v195
        %v197 = vrot.slane %v187, %v196
        %v198 = vmul.f32 %v177, %v193
        %v199 = vmul.f32 %v177, %v197
        %200 = vset.pattern.permute.xlu0 1
        %201 = vperm.xlu0 %200, %v171
        %v202 = vpop.permute.xlu0 %201
        %v204 = vlaneseq
        %v205 = vshrl.u32 %v204, 7
        %v206 = vsub.s32 1, %v205
        %v207 = vrot.slane %v173, %v206
        %v208 = vlaneseq
        %v209 = vshrl.u32 %v208, 7
        %v210 = vsub.s32 5, %v209
        %v211 = vrot.slane %v173, %v210
        %v214 = vlaneseq
        %v215 = vshrl.u32 %v214, 7
        %v216 = vsub.s32 1, %v215
        %v217 = vrot.slane %v207, %v216
        %v218 = vlaneseq
        %v219 = vshrl.u32 %v218, 7
        %v220 = vsub.s32 1, %v219
        %v221 = vrot.slane %v211, %v220
        %v222 = vmul.f32 %v202, %v217
        %v223 = vmul.f32 %v202, %v221
        %224 = vset.pattern.permute.xlu0 2
        %225 = vperm.xlu0 %224, %v171
        %v226 = vpop.permute.xlu0 %225
        %v228 = vlaneseq
        %v229 = vshrl.u32 %v228, 7
        %v230 = vsub.s32 2, %v229
        %v231 = vrot.slane %v173, %v230
        %v232 = vlaneseq
        %v233 = vshrl.u32 %v232, 7
        %v234 = vsub.s32 6, %v233
        %v235 = vrot.slane %v173, %v234
        %v238 = vlaneseq
        %v239 = vshrl.u32 %v238, 7
        %v240 = vsub.s32 2, %v239
        %v241 = vrot.slane %v231, %v240
        %v242 = vlaneseq
        %v243 = vshrl.u32 %v242, 7
        %v244 = vsub.s32 2, %v243
        %v245 = vrot.slane %v235, %v244
        %v246 = vmul.f32 %v226, %v241
        %v247 = vmul.f32 %v226, %v245
        %248 = vset.pattern.permute.xlu0 3
        %249 = vperm.xlu0 %248, %v171
        %v250 = vpop.permute.xlu0 %249
        %v252 = vlaneseq
        %v253 = vshrl.u32 %v252, 7
        %v254 = vsub.s32 3, %v253
        %v255 = vrot.slane %v173, %v254
        %v256 = vlaneseq
        %v257 = vshrl.u32 %v256, 7
        %v258 = vsub.s32 7, %v257
        %v259 = vrot.slane %v173, %v258
        %v262 = vlaneseq
        %v263 = vshrl.u32 %v262, 7
        %v264 = vsub.s32 3, %v263
        %v265 = vrot.slane %v255, %v264
        %v266 = vlaneseq
        %v267 = vshrl.u32 %v266, 7
        %v268 = vsub.s32 3, %v267
        %v269 = vrot.slane %v259, %v268
        %v270 = vmul.f32 %v250, %v265
        %v271 = vmul.f32 %v250, %v269
        %v272 = vadd.f32 %v198, %v222
        %v273 = vadd.f32 %v199, %v223
        %v274 = vadd.f32 %v246, %v270
        %v275 = vadd.f32 %v247, %v271
        %v276 = vadd.f32 %v272, %v274
        %v277 = vadd.f32 %v273, %v275
        %279 = vset.pattern.permute.xlu0 0
        %280 = vperm.xlu0 %279, %v170
        %v281 = vpop.permute.xlu0 %280
        %v283 = vadd.f32 %v276, %v281
        %v284 = vadd.f32 %v277, %v281
        %285 = vst [vmem:[%s163] sm:$0xff] %v283
        %286 = vst [vmem:[%s163 + $0x8] sm:$0xff] %v284
        %s287 = sand.u32 %s93, 1
        %s288 = scalar_lea.sflag [#allocation3], %s287
        %s289 = sand.u32 %s93, 1
        %s290 = smul.addr %s289, 16
        %s291 = scalar_lea.vmem [#allocation2], %s290
        // Predicated region
        $region33: #{tpu_custom_call.1} parent=31 // pred_check
          %p292 = pneg %p103
        $region34: #{tpu_custom_call.1} parent=31 // pred_check_branch
          %294 = sbr.rel (%p292) target = $region36
        $region35: #{tpu_custom_call.1} parent=31 // pred_region
          %s296 = ssub.s32 256, 256
          %297 = vsyncadd %s288, %s296
          %s298 = smul.addr %s17, 2
          %s299 = smul.addr %s298, 128
          %s300 = scalar_lea.hbm %s3, %s299
          %s302 = sshll.u32 %s291, 4
          %s303 = int_to_ptr.vmem [resolvable:$true] %s302
          %305 = dma.vmem_to_hbm [thread:$0]  %s303, 256, %s300, %s288
        $region36: #{tpu_custom_call.1} parent=31 // pred_fallthru
          _
      $region32: #{tpu_custom_call.1} parent=5 // pred_fallthru
        _
      %p306 = scmp.le.s32.totalorder 2, %s12
      // Predicated region
      $region37: #{tpu_custom_call.1} parent=5 // pred_check
        %p307 = pneg %p306
      $region38: #{tpu_custom_call.1} parent=5 // pred_check_branch
        %309 = sbr.rel (%p307) target = $region40
      $region39: #{tpu_custom_call.1} parent=5 // pred_region
        %s310 = ssub.s32 %s12, 2
        // Predicated region
        $region41: #{tpu_custom_call.1} parent=39 // pred_check
          %p311 = pneg %p109
        $region42: #{tpu_custom_call.1} parent=39 // pred_check_branch
          %313 = sbr.rel (%p311) target = $region44
        $region43: #{tpu_custom_call.1} parent=39 // pred_region
          %s314 = sand.u32 %s94, 1
          %s315 = scalar_lea.sflag [#allocation3], %s314
          %s316 = sand.u32 %s94, 1
          %s317 = smul.addr %s316, 16
          %s318 = scalar_lea.vmem [#allocation2], %s317
          %319 = dma.done %s315, 256
        $region44: #{tpu_custom_call.1} parent=39 // pred_fallthru
          _
      $region40: #{tpu_custom_call.1} parent=5 // pred_fallthru
        _
    $region6: #{tpu_custom_call.1} parent=1 // loop_footer
      %s16 = sadd.s32 1, %s12
    $region7: #{tpu_custom_call.1} parent=1 // loop_footer_branch
      %11 = sbr.rel target = $region3
    $region8: #{tpu_custom_call.1} parent=1 // loop_exit
      _
    %320 = vsyncpa [#allocation3], 1
    %s321 = scalar_lea.sflag [#allocation3], 1
    %322 = vsyncpa %s321, 1

</llo_original>
